<compile_context>
chip_gen: v7x
topology: tpu7x:2x2x1
jax: 0.10.0
libtpu: 0.0.40
codegen_flags: <defaults>
</compile_context>

<pallas_src>
import math
import functools

import jax
import jax.numpy as jnp
from jax import lax
from jax.experimental import pallas as pl
from jax.experimental.pallas import tpu as pltpu


_MASK_VALUE = -1e30            # finite "-inf": avoids NaN from (-inf) - (-inf)
_VMEM_LIMIT = 48 * 1024 * 1024  # conservative: fits v5e/v6e (128 MiB) and v7x (64 MiB)


def _pick_tile(dim, preferred=(256, 128)):
    """Largest preferred tile that evenly divides `dim`, else the full dim.

    256-aligned tiles feed the v6e/v7x 256x256 MXU; 128 is the fallback for
    v5e-style shapes.  Small test shapes fall back to the full dimension.
    """
    for t in preferred:
        if dim % t == 0:
            return t
    return dim


# ----------------------------------------------------------------------------
# Tiled projection matmul (bias=False in GPTConfig)
# ----------------------------------------------------------------------------
def _matmul_kernel(x_ref, w_ref, o_ref, acc_ref):
    @pl.when(pl.program_id(2) == 0)
    def _init():
        acc_ref[...] = jnp.zeros_like(acc_ref)

    acc_ref[...] += jnp.dot(
        x_ref[...], w_ref[...], preferred_element_type=jnp.float32
    )

    @pl.when(pl.program_id(2) == pl.num_programs(2) - 1)
    def _store():
        o_ref[...] = acc_ref[...].astype(o_ref.dtype)


def _linear(x2d, w):
    """x2d: (M, K), w: (K, N) -> (M, N). Tiled + pipelined, f32 accumulation."""
    M, K = x2d.shape
    K2, N = w.shape
    assert K == K2
    tm, tn, tk = _pick_tile(M), _pick_tile(N), _pick_tile(K)
    grid = (M // tm, N // tn, K // tk)
    itemsize = jnp.dtype(x2d.dtype).itemsize
    cost = pl.CostEstimate(
        flops=2 * M * N * K,
        transcendentals=0,
        bytes_accessed=(M * K + K * N + M * N) * itemsize,
    )
    return pl.pallas_call(
        _matmul_kernel,
        out_shape=jax.ShapeDtypeStruct((M, N), x2d.dtype),
        grid=grid,
        in_specs=[
            pl.BlockSpec((tm, tk), lambda i, j, k: (i, k)),
            pl.BlockSpec((tk, tn), lambda i, j, k: (k, j)),
        ],
        out_specs=pl.BlockSpec((tm, tn), lambda i, j, k: (i, j)),
        scratch_shapes=[pltpu.VMEM((tm, tn), jnp.float32)],
        compiler_params=pltpu.CompilerParams(
            dimension_semantics=("parallel", "parallel", "arbitrary"),
            vmem_limit_bytes=_VMEM_LIMIT,
        ),
        cost_estimate=cost,
    )(x2d, w)


# ----------------------------------------------------------------------------
# Flash (online-softmax) causal attention
# ----------------------------------------------------------------------------
def _flash_attn_kernel(q_ref, k_ref, v_ref, o_ref, m_ref, l_ref, acc_ref,
                       *, scale, tq, tk):
    qi = pl.program_id(2)
    ki = pl.program_id(3)

    @pl.when(ki == 0)
    def _init():
        m_ref[...] = jnp.full_like(m_ref, _MASK_VALUE)
        l_ref[...] = jnp.zeros_like(l_ref)
        acc_ref[...] = jnp.zeros_like(acc_ref)

    # Causal block skipping: a KV tile contributes only if its first key index
    # is <= the last query index of this Q tile (~2x fewer MXU pushes at large T).
    @pl.when(ki * tk <= qi * tq + (tq - 1))
    def _compute():
        # Fold 1/sqrt(D) into the (tq, D) q tile instead of the (tq, tk) scores.
        q = q_ref[...] * scale                         # stays in input dtype
        k = k_ref[...]
        # Feed the MXU in the input dtype (bf16 stays bf16); accumulate in f32.
        s = jnp.einsum("td,sd->ts", q, k,
                       preferred_element_type=jnp.float32)   # (tq, tk)

        # Intra-block causal mask (finite mask value keeps online softmax NaN-free).
        # TODO(synk): skip the iota/where on fully-below-diagonal blocks.
        row = lax.broadcasted_iota(jnp.int32, (tq, tk), 0) + qi * tq
        col = lax.broadcasted_iota(jnp.int32, (tq, tk), 1) + ki * tk
        s = jnp.where(col <= row, s, _MASK_VALUE)

        # Online softmax update; statistics stay in f32 scratch.
        m_prev = m_ref[...]                            # (tq, 1)
        m_new = jnp.maximum(m_prev, jnp.max(s, axis=-1, keepdims=True))
        alpha = jnp.exp(m_prev - m_new)                # (tq, 1)
        p = jnp.exp(s - m_new)                         # (tq, tk) f32
        l_ref[...] = alpha * l_ref[...] + jnp.sum(p, axis=-1, keepdims=True)
        acc_ref[...] = alpha * acc_ref[...] + jnp.dot(
            p.astype(v_ref.dtype), v_ref[...],
            preferred_element_type=jnp.float32)
        m_ref[...] = m_new

    @pl.when(ki == pl.num_programs(3) - 1)
    def _finalize():
        inv_l = pl.reciprocal(l_ref[...], approx=True)   # EUP slot, off the VALU path
        o_ref[...] = (acc_ref[...] * inv_l).astype(o_ref.dtype)


def _flash_attention(q, k, v):
    """q, k, v: (B, H, T, D) -> (B, H, T, D), causal flash attention."""
    B, H, T, D = q.shape
    scale = 1.0 / math.sqrt(D)
    tq = _pick_tile(T)
    tk = _pick_tile(T)
    grid = (B, H, T // tq, T // tk)          # KV axis last, "arbitrary"

    q_spec = pl.BlockSpec((None, None, tq, D), lambda b, h, i, j: (b, h, i, 0))
    kv_spec = pl.BlockSpec((None, None, tk, D), lambda b, h, i, j: (b, h, j, 0))
    o_spec = pl.BlockSpec((None, None, tq, D), lambda b, h, i, j: (b, h, i, 0))

    itemsize = jnp.dtype(q.dtype).itemsize
    cost = pl.CostEstimate(
        flops=2 * (2 * B * H * T * T * D),        # QK^T + PV (causal skip ~halves this)
        transcendentals=B * H * T * T // 2,
        bytes_accessed=4 * B * H * T * D * itemsize,
    )
    return pl.pallas_call(
        functools.partial(_flash_attn_kernel, scale=scale, tq=tq, tk=tk),
        out_shape=jax.ShapeDtypeStruct((B, H, T, D), q.dtype),
        grid=grid,
        in_specs=[q_spec, kv_spec, kv_spec],
        out_specs=o_spec,
        scratch_shapes=[
            pltpu.VMEM((tq, 1), jnp.float32),   # running max  m
            pltpu.VMEM((tq, 1), jnp.float32),   # running sum  l
            pltpu.VMEM((tq, D), jnp.float32),   # running output accumulator
        ],
        compiler_params=pltpu.CompilerParams(
            dimension_semantics=("parallel", "parallel", "parallel", "arbitrary"),
            vmem_limit_bytes=_VMEM_LIMIT,
        ),
        cost_estimate=cost,
    )(q, k, v)


# ----------------------------------------------------------------------------
# Module-equivalent forward pass
# ----------------------------------------------------------------------------
def flash_causal_self_attention(x, w_attn, w_proj, n_head):
    """
    x:      (B, T, C)
    w_attn: (3C, C)  -- PyTorch nn.Linear weight layout (out_features, in_features)
    w_proj: (C, C)
    Returns (B, T, C), matching FlashCausalSelfAttention.forward (dropout=0, bias=False).
    """
    B, T, C = x.shape
    assert C % n_head == 0
    D = C // n_head

    # qkv = self.c_attn(x)   (y = x @ W^T)
    qkv = _linear(x.reshape(B * T, C), w_attn.T).reshape(B, T, 3 * C)
    q, k, v = jnp.split(qkv, 3, axis=-1)

    # (B, T, C) -> (B, n_head, T, head_dim)
    # TODO(synk): fold these head-split/merge transposes into the projection and
    # attention out_specs (write (B,H,T,D) / lane-offset h*D of a (B,T,C) slab
    # directly) to remove the extra HBM round trips.
    q = q.reshape(B, T, n_head, D).transpose(0, 2, 1, 3)
    k = k.reshape(B, T, n_head, D).transpose(0, 2, 1, 3)
    v = v.reshape(B, T, n_head, D).transpose(0, 2, 1, 3)

    y = _flash_attention(q, k, v)  # (B, H, T, D)

    # merge heads back: (B, H, T, D) -> (B, T, C)
    y = y.transpose(0, 2, 1, 3).reshape(B, T, C)

    # y = self.c_proj(y)
    out = _linear(y.reshape(B * T, C), w_proj.T).reshape(B, T, C)
    return out


# ----------------------------------------------------------------------------
# Pure-JAX reference for sanity checking
# ----------------------------------------------------------------------------
def _reference(x, w_attn, w_proj, n_head):
    B, T, C = x.shape
    D = C // n_head
    qkv = x @ w_attn.T
    q, k, v = jnp.split(qkv, 3, axis=-1)
    q = q.reshape(B, T, n_head, D).transpose(0, 2, 1, 3)
    k = k.reshape(B, T, n_head, D).transpose(0, 2, 1, 3)
    v = v.reshape(B, T, n_head, D).transpose(0, 2, 1, 3)
    s = jnp.einsum("bhtd,bhsd->bhts", q, k) / math.sqrt(D)
    mask = jnp.tril(jnp.ones((T, T), bool))
    s = jnp.where(mask, s, -jnp.inf)
    p = jax.nn.softmax(s, axis=-1)
    y = jnp.einsum("bhts,bhsd->bhtd", p, v)
    y = y.transpose(0, 2, 1, 3).reshape(B, T, C)
    return y @ w_proj.T


if __name__ == "__main__":
    # Small config consistent with the module: n_embd divisible by n_head.
    B, T = 2, 8
    n_head = 4
    n_embd = 32

    key = jax.random.PRNGKey(0)
    kx, kattn, kproj = jax.random.split(key, 3)

    x = jax.random.normal(kx, (B, T, n_embd), dtype=jnp.float32)
    # Deterministic synthetic weights (PyTorch layout: (out_features, in_features))
    w_attn = 0.02 * jax.random.normal(kattn, (3 * n_embd, n_embd), dtype=jnp.float32)
    w_proj = 0.02 * jax.random.normal(kproj, (n_embd, n_embd), dtype=jnp.float32)

    out = flash_causal_self_attention(x, w_attn, w_proj, n_head)
    out = jax.block_until_ready(out)

    ref = _reference(x, w_attn, w_proj, n_head)
    assert out.shape == (B, T, n_embd)
    # slightly looser tolerance: finalize uses the approximate EUP reciprocal
    assert jnp.allclose(out, ref, rtol=2e-3, atol=2e-3), "mismatch vs reference"

    print("KERNEL_OK")
</pallas_src>

<mosaic_0001>
module attributes {stable_mosaic.version = 11 : i64} {
  func.func @_matmul_kernel(%arg0: i32, %arg1: i32, %arg2: i32, %arg3: memref<16x32xf32, #tpu.memory_space<vmem>>, %arg4: memref<32x96xf32, #tpu.memory_space<vmem>>, %arg5: memref<16x96xf32, #tpu.memory_space<vmem>>, %arg6: memref<16x96xf32, #tpu.memory_space<vmem>>) attributes {dimension_semantics = [#tpu.dimension_semantics<parallel>, #tpu.dimension_semantics<parallel>, #tpu.dimension_semantics<arbitrary>], iteration_bounds = array<i64: 1, 1, 1>, scalar_prefetch = 0 : i64, scratch_operands = 1 : i64, tpu.core_type = #tpu.core_type<tc>, window_params = [{transform_indices = @transform_0, window_bounds = array<i64: 16, 32>}, {transform_indices = @transform_1, window_bounds = array<i64: 32, 96>}, {transform_indices = @transform_2, window_bounds = array<i64: 16, 96>}]} {
    %c0_i32 = arith.constant 0 : i32
    %0 = arith.cmpi eq, %arg2, %c0_i32 : i32
    %1 = arith.extui %0 : i1 to i32
    %c0_i32_0 = arith.constant 0 : i32
    %2 = arith.cmpi ne, %1, %c0_i32_0 : i32
    scf.if %2 {
      %cst_10 = arith.constant 0.000000e+00 : f32
      %12 = vector.broadcast %cst_10 : f32 to vector<16x96xf32>
      %c0_11 = arith.constant 0 : index
      %c0_12 = arith.constant 0 : index
      %13 = vector.load %arg6[%c0_11, %c0_12] : memref<16x96xf32, #tpu.memory_space<vmem>>, vector<16x96xf32>
      tpu.vector_store %arg6[%c0_11, %c0_12], %12 {strides = array<i32>} : memref<16x96xf32, #tpu.memory_space<vmem>>, vector<16x96xf32>,
    } else {
    }
    %c0 = arith.constant 0 : index
    %c0_1 = arith.constant 0 : index
    %3 = vector.load %arg6[%c0, %c0_1] : memref<16x96xf32, #tpu.memory_space<vmem>>, vector<16x96xf32>
    %c0_2 = arith.constant 0 : index
    %c0_3 = arith.constant 0 : index
    %4 = vector.load %arg3[%c0_2, %c0_3] : memref<16x32xf32, #tpu.memory_space<vmem>>, vector<16x32xf32>
    %c0_4 = arith.constant 0 : index
    %c0_5 = arith.constant 0 : index
    %5 = vector.load %arg4[%c0_4, %c0_5] : memref<32x96xf32, #tpu.memory_space<vmem>>, vector<32x96xf32>
    %cst = arith.constant dense<0.000000e+00> : vector<16x96xf32>
    %6 = tpu.matmul %4, %5, %cst {dimension_numbers = #tpu.dot_dimension_numbers<[1], [0], [0], [1], [0, 0, 1, 1], [], []>} : vector<16x32xf32>, vector<32x96xf32>, vector<16x96xf32> -> vector<16x96xf32>
    %7 = arith.addf %3, %6 : vector<16x96xf32>
    %c0_6 = arith.constant 0 : index
    %c0_7 = arith.constant 0 : index
    %8 = vector.load %arg6[%c0_6, %c0_7] : memref<16x96xf32, #tpu.memory_space<vmem>>, vector<16x96xf32>
    tpu.vector_store %arg6[%c0_6, %c0_7], %7 {strides = array<i32>} : memref<16x96xf32, #tpu.memory_space<vmem>>, vector<16x96xf32>,
    %c0_i32_8 = arith.constant 0 : i32
    %9 = arith.cmpi eq, %arg2, %c0_i32_8 : i32
    %10 = arith.extui %9 : i1 to i32
    %c0_i32_9 = arith.constant 0 : i32
    %11 = arith.cmpi ne, %10, %c0_i32_9 : i32
    scf.if %11 {
      %c0_10 = arith.constant 0 : index
      %c0_11 = arith.constant 0 : index
      %12 = vector.load %arg6[%c0_10, %c0_11] : memref<16x96xf32, #tpu.memory_space<vmem>>, vector<16x96xf32>
      %c0_12 = arith.constant 0 : index
      %c0_13 = arith.constant 0 : index
      %13 = vector.load %arg5[%c0_12, %c0_13] : memref<16x96xf32, #tpu.memory_space<vmem>>, vector<16x96xf32>
      tpu.vector_store %arg5[%c0_12, %c0_13], %12 {strides = array<i32>} : memref<16x96xf32, #tpu.memory_space<vmem>>, vector<16x96xf32>,
    } else {
    }
    return
  }
  func.func @transform_0(%arg0: i32, %arg1: i32, %arg2: i32) -> (i32, i32) {
    %c0_i32 = arith.constant 0 : i32
    return %arg0, %arg2 : i32, i32
  }
  func.func @transform_1(%arg0: i32, %arg1: i32, %arg2: i32) -> (i32, i32) {
    %c0_i32 = arith.constant 0 : i32
    return %arg2, %arg1 : i32, i32
  }
  func.func @transform_2(%arg0: i32, %arg1: i32, %arg2: i32) -> (i32, i32) {
    %c0_i32 = arith.constant 0 : i32
    return %arg0, %arg1 : i32, i32
  }
}

</mosaic_0001>

<llo_original>
// kernel: tpu_custom_call.1
$region0: #{tpu_custom_call.1}
  #allocation0 [shape = 'u32[]', space=smem, size = 0x4, offset = 0x4, fixed_abs, tag = 'smem constant byte address 0x4 - core index']
  #allocation1 [shape = 'u32[144,128]{1,0:T(1,128)}', space=vmem, size = 0x12000, scoped, tag = 'internal scratch']
  #allocation2 [shape = 'f32[16,96]{1,0:T(8,128)}', space=vmem, size = 0x2000, scoped, tag = 'scratch operand']
  %s0 = inlined_call_operand.hbm [shape: f32[16,32], index: 0, kind: input, shape index: {}]
  %s1 = inlined_call_operand.hbm [shape: f32[32,96], index: 1, kind: input, shape index: {}]
  %s2 = inlined_call_operand.hbm [shape: f32[16,96], index: 2, kind: output, shape index: {}]
  %s3 = sld [smem:[#allocation0]]
  $region34: #{tpu_custom_call.1} parent=0
    _
  %s5 = ssub.s32 1, %s3
  %s6 = scalar_select 0, %s5, %s3
  $region1: #{tpu_custom_call.1} parent=0
    #allocation3 [shape = 'u8[8192]{0}', space=vmem, size = 0x2000, scoped, tag = 'input window, operand 0, single buffered']
    #allocation4 [shape = 's32[1]{0}', space=sflag, size = 0x4, scoped, tag = 'scoped memory for tpu_custom_call.1']
    #allocation5 [shape = 's32[1]{0}', space=sflag, size = 0x4, scoped, tag = 'scoped memory for tpu_custom_call.1']
    #allocation6 [shape = 'u8[16384]{0}', space=vmem, size = 0x4000, scoped, tag = 'input window, operand 1, single buffered']
    #allocation7 [shape = 's32[1]{0}', space=sflag, size = 0x4, scoped, tag = 'scoped memory for tpu_custom_call.1']
    #allocation8 [shape = 'u8[8192]{0}', space=vmem, size = 0x2000, scoped, tag = 'output window, operand 0, single buffered']
    %7 = vsyncpa [#allocation4], 0
    %8 = vsyncpa [#allocation7], 0
    %9 = vsyncpa [#allocation5], 0
    // Predicated region
    $region2: #{tpu_custom_call.1} parent=1 // pred_check
      _
    $region3: #{tpu_custom_call.1} parent=1 // pred_check_branch
      %11 = sbr.rel (0) target = $region5
    $region4: #{tpu_custom_call.1} parent=1 // pred_region
      %s13 = ssub.s32 256, 256
      %14 = vsyncadd [#allocation4], %s13
      %s15 = sshll.u32 [#allocation3], 4
      %s16 = int_to_ptr.vmem [resolvable:$true] %s15
      %21 = dma.hbm_to_vmem [thread:$0]  %s0, 256, %s16, [#allocation4], 128, 128, 8
    $region5: #{tpu_custom_call.1} parent=1 // pred_fallthru
      _
    // Predicated region
    $region6: #{tpu_custom_call.1} parent=1 // pred_check
      _
    $region7: #{tpu_custom_call.1} parent=1 // pred_check_branch
      %23 = sbr.rel (0) target = $region9
    $region8: #{tpu_custom_call.1} parent=1 // pred_region
      %s25 = ssub.s32 512, 512
      %26 = vsyncadd [#allocation7], %s25
      %s27 = sshll.u32 [#allocation6], 4
      %s28 = int_to_ptr.vmem [resolvable:$true] %s27
      %33 = dma.hbm_to_vmem [thread:$0]  %s1, 512, %s28, [#allocation7], 128, 128, 8
    $region9: #{tpu_custom_call.1} parent=1 // pred_fallthru
      _
    // Predicated region
    $region10: #{tpu_custom_call.1} parent=1 // pred_check
      _
    $region11: #{tpu_custom_call.1} parent=1 // pred_check_branch
      %35 = sbr.rel (0) target = $region13
    $region12: #{tpu_custom_call.1} parent=1 // pred_region
      %36 = dma.done [#allocation4], 256
    $region13: #{tpu_custom_call.1} parent=1 // pred_fallthru
      _
    // Predicated region
    $region14: #{tpu_custom_call.1} parent=1 // pred_check
      _
    $region15: #{tpu_custom_call.1} parent=1 // pred_check_branch
      %38 = sbr.rel (0) target = $region17
    $region16: #{tpu_custom_call.1} parent=1 // pred_region
      %39 = dma.done [#allocation7], 512
    $region17: #{tpu_custom_call.1} parent=1 // pred_fallthru
      _
    %p40 = scmp.eq.s32.totalorder 0, 0
    // Predicated region
    $region18: #{tpu_custom_call.1} parent=1 // pred_check
      %p41 = pneg %p40
    $region19: #{tpu_custom_call.1} parent=1 // pred_check_branch
      %43 = sbr.rel (%p41) target = $region21
    $region20: #{tpu_custom_call.1} parent=1 // pred_region
      %vm44 = vcmask 785408
      %45 = vst.msk [vmem:[#allocation2] sm:$0xff] %vm44, 0.0
      %46 = vst.msk [vmem:[#allocation2 + $0x8] sm:$0xff] %vm44, 0.0
    $region21: #{tpu_custom_call.1} parent=1 // pred_fallthru
      _
    %v47 = vld [vmem:[#allocation2] sm:$0xff]
    %v48 = vld [vmem:[#allocation2 + $0x8] sm:$0xff]
    %v49 = vld [vmem:[#allocation3] sm:$0xff]
    %v50 = vld [vmem:[#allocation3 + $0x8] sm:$0xff]
    %v51 = vld [vmem:[#allocation6] sm:$0xff]
    %v52 = vld [vmem:[#allocation6 + $0x8] sm:$0xff]
    %v53 = vld [vmem:[#allocation6 + $0x10] sm:$0xff]
    %v54 = vld [vmem:[#allocation6 + $0x18] sm:$0xff]
    %vm55 = vcmask 261120
    %v57 = vsel %vm55, %v49, 0
    %v60 = vsel %vm55, %v50, 0
    %62 = vmatprep.subr.mxu0 0.0
    %63 = vmatpush1.msra.mxu0 %v51
    %64 = vmatprep.subr.mxu0 0.0
    %65 = vmatpush1.msra.mxu0 %v52
    %66 = vmatprep.subr.mxu0 0.0
    %67 = vmatpush1.msra.mxu0 %v53
    %68 = vmatprep.subr.mxu0 0.0
    %69 = vmatpush1.msra.mxu0 %v54
    %70 = vmatprep.subr.mxu0 0.0
    %71 = vmatpush1.msra.mxu0 0.0
    %72 = vmatprep.subr.mxu0 0.0
    %73 = vmatpush1.msra.mxu0 0.0
    %74 = vmatprep.subr.mxu0 0.0
    %75 = vmatpush1.msra.mxu0 0.0
    %76 = vmatprep.subr.mxu0 0.0
    %77 = vmatpush1.msra.mxu0 0.0
    %78 = vmatprep.subr.mxu0 0.0
    %79 = vmatpush1.msra.mxu0 0.0
    %80 = vmatprep.subr.mxu0 0.0
    %81 = vmatpush1.msra.mxu0 0.0
    %82 = vmatprep.subr.mxu0 0.0
    %83 = vmatpush1.msra.mxu0 0.0
    %84 = vmatprep.subr.mxu0 0.0
    %85 = vmatpush1.msra.mxu0 0.0
    %86 = vmatprep.subr.mxu0 0.0
    %87 = vmatpush1.msra.mxu0 0.0
    %88 = vmatprep.subr.mxu0 0.0
    %89 = vmatpush1.msra.mxu0 0.0
    %90 = vmatprep.subr.mxu0 0.0
    %91 = vmatpush1.msra.mxu0 0.0
    %92 = vmatprep.subr.mxu0 0.0
    %93 = vmatpush1.msra.mxu0 0.0
    %94 = vmatprep.subr.mxu0 0.0
    %95 = vmatpush1.msra.mxu0 0.0
    %96 = vmatprep.subr.mxu0 0.0
    %97 = vmatpush1.msra.mxu0 0.0
    %98 = vmatprep.subr.mxu0 0.0
    %99 = vmatpush1.msra.mxu0 0.0
    %100 = vmatprep.subr.mxu0 0.0
    %101 = vmatpush1.msra.mxu0 0.0
    %102 = vmatprep.subr.mxu0 0.0
    %103 = vmatpush1.msra.mxu0 0.0
    %104 = vmatprep.subr.mxu0 0.0
    %105 = vmatpush1.msra.mxu0 0.0
    %106 = vmatprep.subr.mxu0 0.0
    %107 = vmatpush1.msra.mxu0 0.0
    %108 = vmatprep.subr.mxu0 0.0
    %109 = vmatpush1.msra.mxu0 0.0
    %110 = vmatprep.subr.mxu0 0.0
    %111 = vmatpush1.msra.mxu0 0.0
    %112 = vmatprep.subr.mxu0 0.0
    %113 = vmatpush1.msra.mxu0 0.0
    %114 = vmatprep.subr.mxu0 0.0
    %115 = vmatpush1.msra.mxu0 0.0
    %116 = vmatprep.subr.mxu0 0.0
    %117 = vmatpush1.msra.mxu0 0.0
    %118 = vmatprep.subr.mxu0 0.0
    %119 = vmatpush1.msra.mxu0 0.0
    %120 = vmatprep.subr.mxu0 0.0
    %121 = vmatpush1.msra.mxu0 0.0
    %122 = vmatprep.subr.mxu0 0.0
    %123 = vmatpush1.msra.mxu0 0.0
    %124 = vmatprep.subr.mxu0 0.0
    %125 = vmatpush1.msra.mxu0 0.0
    %126 = vmatprep.mubr.f32.mxu0 0.0
    %127 = vmatmul.mubr.f32.gmra.mrb[0].mxu0 %v57
    %v128 = vpop.f32.mrb[0].mxu0
    %v129 = vadd.f32 0.0, %v128
    %v130 = vpop.f32.mrb[0].mxu0
    %131 = vmatprep.mubr.f32.mxu0 0.0
    %132 = vmatmul.mubr.f32.gmra.mrb[0].mxu0 %v60
    %v133 = vpop.f32.mrb[0].mxu0
    %v134 = vadd.f32 0.0, %v133
    %v135 = vpop.f32.mrb[0].mxu0
    %136 = vdwg.mxu0
    %v137 = vadd.f32 %v47, %v129
    %v138 = vadd.f32 %v48, %v134
    %vm139 = vcmask 785408
    %140 = vst.msk [vmem:[#allocation2] sm:$0xff] %vm139, %v137
    %141 = vst.msk [vmem:[#allocation2 + $0x8] sm:$0xff] %vm139, %v138
    // Predicated region
    $region22: #{tpu_custom_call.1} parent=1 // pred_check
      %p142 = pneg %p40
    $region23: #{tpu_custom_call.1} parent=1 // pred_check_branch
      %144 = sbr.rel (%p142) target = $region25
    $region24: #{tpu_custom_call.1} parent=1 // pred_region
      %v145 = vld [vmem:[#allocation2] sm:$0xff]
      %v146 = vld [vmem:[#allocation2 + $0x8] sm:$0xff]
      %147 = vst.msk [vmem:[#allocation8] sm:$0xff] %vm139, %v145
      %148 = vst.msk [vmem:[#allocation8 + $0x8] sm:$0xff] %vm139, %v146
    $region25: #{tpu_custom_call.1} parent=1 // pred_fallthru
      _
    // Predicated region
    $region26: #{tpu_custom_call.1} parent=1 // pred_check
      _
    $region27: #{tpu_custom_call.1} parent=1 // pred_check_branch
      %150 = sbr.rel (0) target = $region29
    $region28: #{tpu_custom_call.1} parent=1 // pred_region
      %s152 = ssub.s32 256, 256
      %153 = vsyncadd [#allocation5], %s152
      %s154 = sshll.u32 [#allocation8], 4
      %s155 = int_to_ptr.vmem [resolvable:$true] %s154
      %160 = dma.vmem_to_hbm [thread:$0]  %s155, 256, %s2, [#allocation5], 128, 128, 8
    $region29: #{tpu_custom_call.1} parent=1 // pred_fallthru
      _
    // Predicated region
    $region30: #{tpu_custom_call.1} parent=1 // pred_check
      _
    $region31: #{tpu_custom_call.1} parent=1 // pred_check_branch
      %162 = sbr.rel (0) target = $region33
    $region32: #{tpu_custom_call.1} parent=1 // pred_region
      %163 = dma.done [#allocation5], 256
    $region33: #{tpu_custom_call.1} parent=1 // pred_fallthru
      _
    %164 = vsyncpa [#allocation4], 1
    %165 = vsyncpa [#allocation7], 1
    %166 = vsyncpa [#allocation5], 1

</llo_original>
